<compile_context>
chip_gen: v7x
topology: tpu7x:2x2x1
jax: 0.10.0
libtpu: 0.0.40
codegen_flags: <defaults>
</compile_context>

<pallas_src>
import functools

import jax
import jax.numpy as jnp
from jax.experimental import pallas as pl
from jax.experimental.pallas import tpu as pltpu

LATENT_DIM = 100
CLASS_LABEL_SIZE = 10
HIDDEN = 256
NEG_SLOPE = 0.2

K_PAD = 128                                 # lane-aligned fused contraction dim
BIAS_COL = LATENT_DIM + CLASS_LABEL_SIZE    # 110: the "1.0" bias column
TM_PREF = 512                               # preferred batch tile (multiple of 8)


def _round_up(x, m):
    return (x + m - 1) // m * m


def _generator_kernel(x_ref, w_ref, out_ref, *, apply_relu):
    # Single K=128, N=256 MXU matmul; embedding + bias already folded into W.
    raw = jnp.dot(x_ref[...], w_ref[...], preferred_element_type=jnp.float32)
    if apply_relu:
        raw = jnp.where(raw >= 0, raw, NEG_SLOPE * raw)
    out_ref[...] = raw.astype(out_ref.dtype)


@functools.partial(jax.jit, static_argnames=("output_before_relu",))
def generator_forward(z, labels, params, output_before_relu=False):
    """JAX wrapper: fuse weights/inputs, then one tiled Pallas matmul kernel."""
    B = z.shape[0]
    z = z.reshape(B, LATENT_DIM).astype(jnp.float32)
    onehot = jax.nn.one_hot(labels, CLASS_LABEL_SIZE, dtype=jnp.float32)

    emb = params["emb"].astype(jnp.float32)            # (10, 10)
    wz = params["w"][:LATENT_DIM, :].astype(jnp.float32)   # (100, 256)
    wc = params["w"][LATENT_DIM:, :].astype(jnp.float32)   # (10, 256)
    b = params["b"].astype(jnp.float32)                 # (256,)

    # Fused, lane-aligned weight: [W_z ; Emb @ W_c ; b ; zero-pad] -> (128, 256)
    w_fused = jnp.concatenate(
        [wz,
         emb @ wc,
         b[None, :],
         jnp.zeros((K_PAD - BIAS_COL - 1, HIDDEN), jnp.float32)],
        axis=0)

    # Fused, lane-aligned input: [z | one_hot | 1.0 | zero-pad] -> (B_pad, 128)
    tm = min(TM_PREF, _round_up(B, 8))
    b_pad = _round_up(B, tm)
    x = jnp.concatenate(
        [z,
         onehot,
         jnp.ones((B, 1), jnp.float32),
         jnp.zeros((B, K_PAD - BIAS_COL - 1), jnp.float32)],
        axis=1)
    x = jnp.pad(x, ((0, b_pad - B), (0, 0)))

    kernel = functools.partial(_generator_kernel,
                               apply_relu=not output_before_relu)
    out = pl.pallas_call(
        kernel,
        out_shape=jax.ShapeDtypeStruct((b_pad, HIDDEN), jnp.float32),
        grid=(b_pad // tm,),
        in_specs=[
            pl.BlockSpec((tm, K_PAD), lambda i: (i, 0)),       # batch-tiled x
            pl.BlockSpec((K_PAD, HIDDEN), lambda i: (0, 0)),   # resident weight
        ],
        out_specs=pl.BlockSpec((tm, HIDDEN), lambda i: (i, 0)),
        compiler_params=pltpu.CompilerParams(
            dimension_semantics=("parallel",)),
    )(x, w_fused)

    return out[:B]


def init_params(key):
    """Deterministic parameter init (mirrors PyTorch default init schemes)."""
    k_emb, k_w, k_b = jax.random.split(key, 3)
    # nn.Embedding: N(0, 1)
    emb = jax.random.normal(k_emb, (CLASS_LABEL_SIZE, CLASS_LABEL_SIZE), jnp.float32)
    # nn.Linear(110, 256): U(-1/sqrt(fan_in), 1/sqrt(fan_in)); stored as (in, out)
    fan_in = LATENT_DIM + CLASS_LABEL_SIZE
    bound = 1.0 / jnp.sqrt(jnp.float32(fan_in))
    w = jax.random.uniform(k_w, (fan_in, HIDDEN), jnp.float32, -bound, bound)
    b = jax.random.uniform(k_b, (HIDDEN,), jnp.float32, -bound, bound)
    return {"emb": emb, "w": w, "b": b}


def _reference_forward(z, labels, params, output_before_relu=False):
    """Pure-JAX reference matching the PyTorch forward."""
    B = z.shape[0]
    z = z.reshape(B, LATENT_DIM)
    c = params["emb"][labels]
    x = jnp.concatenate([z, c], axis=1)
    raw = x @ params["w"] + params["b"]
    if output_before_relu:
        return raw
    return jnp.where(raw >= 0, raw, NEG_SLOPE * raw)


if __name__ == "__main__":
    key = jax.random.PRNGKey(0)
    k_params, k_z, k_lab = jax.random.split(key, 3)

    B = 4
    params = init_params(k_params)
    z = jax.random.normal(k_z, (B, LATENT_DIM), jnp.float32)
    labels = jax.random.randint(k_lab, (B,), 0, CLASS_LABEL_SIZE, jnp.int32)

    out_act = generator_forward(z, labels, params, output_before_relu=False)
    out_raw = generator_forward(z, labels, params, output_before_relu=True)
    jax.block_until_ready((out_act, out_raw))

    ref_act = _reference_forward(z, labels, params, output_before_relu=False)
    ref_raw = _reference_forward(z, labels, params, output_before_relu=True)
    assert out_act.shape == (B, HIDDEN) and out_raw.shape == (B, HIDDEN)
    assert jnp.allclose(out_act, ref_act, atol=1e-4, rtol=1e-4)
    assert jnp.allclose(out_raw, ref_raw, atol=1e-4, rtol=1e-4)

    print("KERNEL_OK")
</pallas_src>

<mosaic_0001>
module attributes {stable_mosaic.version = 11 : i64} {
  func.func @_generator_kernel(%arg0: i32, %arg1: memref<8x128xf32, #tpu.memory_space<vmem>>, %arg2: memref<128x256xf32, #tpu.memory_space<vmem>>, %arg3: memref<8x256xf32, #tpu.memory_space<vmem>>) attributes {dimension_semantics = [#tpu.dimension_semantics<parallel>], iteration_bounds = array<i64: 1>, scalar_prefetch = 0 : i64, scratch_operands = 0 : i64, tpu.core_type = #tpu.core_type<tc>, window_params = [{transform_indices = @transform_0, window_bounds = array<i64: 8, 128>}, {pipeline_mode = #tpu.pipeline_mode<synchronous>, transform_indices = @transform_1, window_bounds = array<i64: 128, 256>}, {transform_indices = @transform_2, window_bounds = array<i64: 8, 256>}]} {
    %c0 = arith.constant 0 : index
    %c0_0 = arith.constant 0 : index
    %0 = vector.load %arg1[%c0, %c0_0] : memref<8x128xf32, #tpu.memory_space<vmem>>, vector<8x128xf32>
    %c0_1 = arith.constant 0 : index
    %c0_2 = arith.constant 0 : index
    %1 = vector.load %arg2[%c0_1, %c0_2] : memref<128x256xf32, #tpu.memory_space<vmem>>, vector<128x256xf32>
    %cst = arith.constant dense<0.000000e+00> : vector<8x256xf32>
    %2 = tpu.matmul %0, %1, %cst {dimension_numbers = #tpu.dot_dimension_numbers<[1], [0], [0], [1], [0, 0, 1, 1], [], []>} : vector<8x128xf32>, vector<128x256xf32>, vector<8x256xf32> -> vector<8x256xf32>
    %cst_3 = arith.constant 0.000000e+00 : f32
    %3 = vector.broadcast %cst_3 : f32 to vector<8x256xf32>
    %4 = arith.cmpf oge, %2, %3 : vector<8x256xf32>
    %cst_4 = arith.constant 2.000000e-01 : f32
    %5 = vector.broadcast %cst_4 : f32 to vector<8x256xf32>
    %6 = arith.mulf %5, %2 : vector<8x256xf32>
    %7 = arith.select %4, %2, %6 : vector<8x256xi1>, vector<8x256xf32>
    %c0_5 = arith.constant 0 : index
    %c0_6 = arith.constant 0 : index
    %8 = vector.load %arg3[%c0_5, %c0_6] : memref<8x256xf32, #tpu.memory_space<vmem>>, vector<8x256xf32>
    tpu.vector_store %arg3[%c0_5, %c0_6], %7 {strides = array<i32>} : memref<8x256xf32, #tpu.memory_space<vmem>>, vector<8x256xf32>,
    return
  }
  func.func @transform_0(%arg0: i32) -> (i32, i32) {
    %c0_i32 = arith.constant 0 : i32
    %c0_i32_0 = arith.constant 0 : i32
    return %arg0, %c0_i32 : i32, i32
  }
  func.func @transform_1(%arg0: i32) -> (i32, i32) {
    %c0_i32 = arith.constant 0 : i32
    %c0_i32_0 = arith.constant 0 : i32
    %c0_i32_1 = arith.constant 0 : i32
    return %c0_i32, %c0_i32_0 : i32, i32
  }
  func.func @transform_2(%arg0: i32) -> (i32, i32) {
    %c0_i32 = arith.constant 0 : i32
    %c0_i32_0 = arith.constant 0 : i32
    return %arg0, %c0_i32 : i32, i32
  }
}

</mosaic_0001>

<llo_original>
// kernel: generator_forward.1
$region0: #{generator_forward.1}
  #allocation0 [shape = 'u32[]', space=smem, size = 0x4, offset = 0x4, fixed_abs, tag = 'smem constant byte address 0x4 - core index']
  #allocation1 [shape = 'u32[144,128]{1,0:T(1,128)}', space=vmem, size = 0x12000, scoped, tag = 'internal scratch']
  %s0 = inlined_call_operand.vmem [shape: f32[8,128], index: 0, kind: input, shape index: {}]
  %s1 = inlined_call_operand.vmem [shape: f32[128,256], index: 1, kind: input, shape index: {}]
  %s2 = inlined_call_operand.vmem [shape: f32[8,256], index: 2, kind: output, shape index: {}]
  %s3 = sld [smem:[#allocation0]]
  $region18: #{generator_forward.1} parent=0
    _
  %s5 = ssub.s32 1, %s3
  %s6 = scalar_select 0, %s5, %s3
  // Predicated region
  $region2: #{generator_forward.1} parent=0 // pred_check
    _
  $region3: #{generator_forward.1} parent=0 // pred_check_branch
    %8 = sbr.rel (0) target = $region5
  $region4: #{generator_forward.1} parent=0 // pred_region
    _
  $region5: #{generator_forward.1} parent=0 // pred_fallthru
    _
  // Predicated region
  $region6: #{generator_forward.1} parent=0 // pred_check
    _
  $region7: #{generator_forward.1} parent=0 // pred_check_branch
    %10 = sbr.rel (0) target = $region9
  $region8: #{generator_forward.1} parent=0 // pred_region
    _
  $region9: #{generator_forward.1} parent=0 // pred_fallthru
    _
  %v11 = vld [vmem:[%s0] sm:$0xff]
  %v12 = vld [vmem:[%s1] sm:$0xff]
  %v13 = vld [vmem:[%s1 + $0x8] sm:$0xff]
  %v14 = vld [vmem:[%s1 + $0x10] sm:$0xff]
  %v15 = vld [vmem:[%s1 + $0x18] sm:$0xff]
  %v16 = vld [vmem:[%s1 + $0x20] sm:$0xff]
  %v17 = vld [vmem:[%s1 + $0x28] sm:$0xff]
  %v18 = vld [vmem:[%s1 + $0x30] sm:$0xff]
  %v19 = vld [vmem:[%s1 + $0x38] sm:$0xff]
  %v20 = vld [vmem:[%s1 + $0x40] sm:$0xff]
  %v21 = vld [vmem:[%s1 + $0x48] sm:$0xff]
  %v22 = vld [vmem:[%s1 + $0x50] sm:$0xff]
  %v23 = vld [vmem:[%s1 + $0x58] sm:$0xff]
  %v24 = vld [vmem:[%s1 + $0x60] sm:$0xff]
  %v25 = vld [vmem:[%s1 + $0x68] sm:$0xff]
  %v26 = vld [vmem:[%s1 + $0x70] sm:$0xff]
  %v27 = vld [vmem:[%s1 + $0x78] sm:$0xff]
  %v28 = vld [vmem:[%s1 + $0x80] sm:$0xff]
  %v29 = vld [vmem:[%s1 + $0x88] sm:$0xff]
  %v30 = vld [vmem:[%s1 + $0x90] sm:$0xff]
  %v31 = vld [vmem:[%s1 + $0x98] sm:$0xff]
  %v32 = vld [vmem:[%s1 + $0xa0] sm:$0xff]
  %v33 = vld [vmem:[%s1 + $0xa8] sm:$0xff]
  %v34 = vld [vmem:[%s1 + $0xb0] sm:$0xff]
  %v35 = vld [vmem:[%s1 + $0xb8] sm:$0xff]
  %v36 = vld [vmem:[%s1 + $0xc0] sm:$0xff]
  %v37 = vld [vmem:[%s1 + $0xc8] sm:$0xff]
  %v38 = vld [vmem:[%s1 + $0xd0] sm:$0xff]
  %v39 = vld [vmem:[%s1 + $0xd8] sm:$0xff]
  %v40 = vld [vmem:[%s1 + $0xe0] sm:$0xff]
  %v41 = vld [vmem:[%s1 + $0xe8] sm:$0xff]
  %v42 = vld [vmem:[%s1 + $0xf0] sm:$0xff]
  %v43 = vld [vmem:[%s1 + $0xf8] sm:$0xff]
  %44 = vmatprep.subr.mxu0 %v13
  %45 = vmatpush1.msra.mxu0 %v12
  %46 = vmatprep.subr.mxu0 %v15
  %47 = vmatpush1.msra.mxu0 %v14
  %48 = vmatprep.subr.mxu0 %v17
  %49 = vmatpush1.msra.mxu0 %v16
  %50 = vmatprep.subr.mxu0 %v19
  %51 = vmatpush1.msra.mxu0 %v18
  %52 = vmatprep.subr.mxu0 %v21
  %53 = vmatpush1.msra.mxu0 %v20
  %54 = vmatprep.subr.mxu0 %v23
  %55 = vmatpush1.msra.mxu0 %v22
  %56 = vmatprep.subr.mxu0 %v25
  %57 = vmatpush1.msra.mxu0 %v24
  %58 = vmatprep.subr.mxu0 %v27
  %59 = vmatpush1.msra.mxu0 %v26
  %60 = vmatprep.subr.mxu0 %v29
  %61 = vmatpush1.msra.mxu0 %v28
  %62 = vmatprep.subr.mxu0 %v31
  %63 = vmatpush1.msra.mxu0 %v30
  %64 = vmatprep.subr.mxu0 %v33
  %65 = vmatpush1.msra.mxu0 %v32
  %66 = vmatprep.subr.mxu0 %v35
  %67 = vmatpush1.msra.mxu0 %v34
  %68 = vmatprep.subr.mxu0 %v37
  %69 = vmatpush1.msra.mxu0 %v36
  %70 = vmatprep.subr.mxu0 %v39
  %71 = vmatpush1.msra.mxu0 %v38
  %72 = vmatprep.subr.mxu0 %v41
  %73 = vmatpush1.msra.mxu0 %v40
  %74 = vmatprep.subr.mxu0 %v43
  %75 = vmatpush1.msra.mxu0 %v42
  %76 = vmatprep.subr.mxu0 0.0
  %77 = vmatpush1.msra.mxu0 0.0
  %78 = vmatprep.subr.mxu0 0.0
  %79 = vmatpush1.msra.mxu0 0.0
  %80 = vmatprep.subr.mxu0 0.0
  %81 = vmatpush1.msra.mxu0 0.0
  %82 = vmatprep.subr.mxu0 0.0
  %83 = vmatpush1.msra.mxu0 0.0
  %84 = vmatprep.subr.mxu0 0.0
  %85 = vmatpush1.msra.mxu0 0.0
  %86 = vmatprep.subr.mxu0 0.0
  %87 = vmatpush1.msra.mxu0 0.0
  %88 = vmatprep.subr.mxu0 0.0
  %89 = vmatpush1.msra.mxu0 0.0
  %90 = vmatprep.subr.mxu0 0.0
  %91 = vmatpush1.msra.mxu0 0.0
  %92 = vmatprep.subr.mxu0 0.0
  %93 = vmatpush1.msra.mxu0 0.0
  %94 = vmatprep.subr.mxu0 0.0
  %95 = vmatpush1.msra.mxu0 0.0
  %96 = vmatprep.subr.mxu0 0.0
  %97 = vmatpush1.msra.mxu0 0.0
  %98 = vmatprep.subr.mxu0 0.0
  %99 = vmatpush1.msra.mxu0 0.0
  %100 = vmatprep.subr.mxu0 0.0
  %101 = vmatpush1.msra.mxu0 0.0
  %102 = vmatprep.subr.mxu0 0.0
  %103 = vmatpush1.msra.mxu0 0.0
  %104 = vmatprep.subr.mxu0 0.0
  %105 = vmatpush1.msra.mxu0 0.0
  %106 = vmatprep.subr.mxu0 0.0
  %107 = vmatpush1.msra.mxu0 0.0
  %108 = vmatprep.mubr.f32.mxu0 0.0
  %109 = vmatmul.mubr.f32.gmra.mrb[0].mxu0 %v11
  %v110 = vpop.f32.mrb[0].mxu0
  %v111 = vadd.f32 0.0, %v110
  %v112 = vpop.f32.mrb[0].mxu0
  %v113 = vadd.f32 0.0, %v112
  %114 = vdwg.mxu0
  %vm115 = vcmp.ge.f32.partialorder %v111, 0.0
  %vm116 = vcmp.ge.f32.partialorder %v113, 0.0
  %v117 = vmul.f32 %v111, 0.2
  %v118 = vmul.f32 %v113, 0.2
  %v119 = vsel %vm115, %v111, %v117
  %v120 = vsel %vm116, %v113, %v118
  %121 = vst [vmem:[%s2] sm:$0xff] %v119
  %122 = vst [vmem:[%s2 + $0x8] sm:$0xff] %v120
  // Predicated region
  $region10: #{generator_forward.1} parent=0 // pred_check
    _
  $region11: #{generator_forward.1} parent=0 // pred_check_branch
    %124 = sbr.rel (0) target = $region13
  $region12: #{generator_forward.1} parent=0 // pred_region
    _
  $region13: #{generator_forward.1} parent=0 // pred_fallthru
    _
  // Predicated region
  $region14: #{generator_forward.1} parent=0 // pred_check
    _
  $region15: #{generator_forward.1} parent=0 // pred_check_branch
    %126 = sbr.rel (0) target = $region17
  $region16: #{generator_forward.1} parent=0 // pred_region
    _
  $region17: #{generator_forward.1} parent=0 // pred_fallthru
    _

</llo_original>
